<compile_context>
chip_gen: v6e
topology: v6e:2x2x1
jax: 0.10.0
libtpu: 0.0.40
codegen_flags: <defaults>
</compile_context>

<pallas_src>
import math

import jax
import jax.numpy as jnp
from jax.experimental import pallas as pl
from jax.experimental.pallas import tpu as pltpu


def _ceil_to(a, m):
    return ((a + m - 1) // m) * m


def token_embed_kernel(x_ref, w_ref, o_ref):
    # x_ref: (nb, L, C)   w_ref: (3, C, Dp)   o_ref: (nb, L, Dp)
    nb, L, C = x_ref.shape
    Dp = o_ref.shape[-1]

    x3 = x_ref[...]                        # (nb, L, C)
    xp3 = jnp.roll(x3, 1, axis=1)          # xp3[b, t] = x[b, (t-1) % L]
    xn3 = jnp.roll(x3, -1, axis=1)         # xn3[b, t] = x[b, (t+1) % L]

    x2 = x3.reshape(nb * L, C)             # leading-dim merge only (cheap / no-op)
    xp2 = xp3.reshape(nb * L, C)
    xn2 = xn3.reshape(nb * L, C)

    acc = jnp.dot(xp2, w_ref[0], preferred_element_type=jnp.float32)
    acc += jnp.dot(x2, w_ref[1], preferred_element_type=jnp.float32)
    acc += jnp.dot(xn2, w_ref[2], preferred_element_type=jnp.float32)

    o_ref[...] = acc.reshape(nb, L, Dp).astype(o_ref.dtype)


def token_embedding(x, w_k, *, row_tile=2048, vmem_budget_bytes=40 * 1024 * 1024):
    """Circular Conv1d(k=3, pad=1, circular, no bias) token embedding.

    x: (B, L, C_in); w_k: (3, C_in, d_model) with w_k[k] = W[:, :, k].T
    returns (B, L, d_model).
    """
    B, L, C = x.shape
    D = w_k.shape[-1]

    # Lane-dense output: pad d_model up to a multiple of 128 (no-op for D=512 etc.).
    Dp = _ceil_to(max(D, 128), 128)
    w = w_k if Dp == D else jnp.pad(w_k, ((0, 0), (0, 0), (0, Dp - D)))

    itemsize = jnp.dtype(x.dtype).itemsize
    Lp = _ceil_to(L, 8)

    # Rough per-batch VMEM footprint: double-buffered input (C lane-padded to 128) and
    # output blocks, plus in-kernel shifted copies and the f32 accumulator.
    per_batch = Lp * (2 * 128 * itemsize        # input block, double-buffered
                      + 2 * Dp * itemsize       # output block, double-buffered
                      + 2 * 128 * itemsize      # x_prev / x_next temporaries
                      + Dp * 4)                 # f32 accumulator

    # Rows per grid step: aim for ~row_tile rows, stay inside the VMEM budget, and
    # keep >= ~4 grid steps when B allows (megacore sharding on v7x).
    nb = min(B,
             max(1, row_tile // L),
             max(1, vmem_budget_bytes // max(per_batch, 1)))
    nb = min(nb, max(1, pl.cdiv(B, 4)))
    if L % 8 != 0:
        nb = 1  # keep the in-kernel (nb, L) -> (nb*L) merge a pure retiling
    grid = (pl.cdiv(B, nb),)

    w_bytes = 3 * _ceil_to(C, 8) * Dp * 4
    vmem_limit = int(min(max(nb * per_batch + w_bytes + (4 << 20), 32 << 20), 64 << 20))

    cost = pl.CostEstimate(
        flops=2 * B * L * 3 * C * D,
        transcendentals=0,
        bytes_accessed=B * L * C * itemsize + 3 * C * Dp * 4 + B * L * Dp * itemsize,
    )

    out = pl.pallas_call(
        token_embed_kernel,
        out_shape=jax.ShapeDtypeStruct((B, L, Dp), x.dtype),
        grid_spec=pltpu.PrefetchScalarGridSpec(
            num_scalar_prefetch=0,
            grid=grid,
            in_specs=[
                pl.BlockSpec((nb, L, C), lambda i: (i, 0, 0)),
                pl.BlockSpec((3, C, Dp), lambda i: (0, 0, 0)),  # grid-invariant weight
            ],
            out_specs=pl.BlockSpec((nb, L, Dp), lambda i: (i, 0, 0)),
        ),
        compiler_params=pltpu.CompilerParams(
            dimension_semantics=("parallel",),
            vmem_limit_bytes=vmem_limit,
        ),
        cost_estimate=cost,
    )(x, w)

    # TODO(synk): extremely long sequences (L*d_model*4 approaching VMEM) would need an
    # L-tiled halo variant; full-sequence-per-batch tiles are fine for typical shapes.
    return out if Dp == D else out[:, :, :D]


def reference_forward(x, w_k):
    """Pure-JAX reference of the circular conv (for verification)."""
    B, L, C = x.shape
    xpad = jnp.concatenate([x[:, -1:, :], x, x[:, :1, :]], axis=1)  # (B, L+2, C)
    return (
        jnp.einsum("blc,cd->bld", xpad[:, 0:L, :], w_k[0])
        + jnp.einsum("blc,cd->bld", xpad[:, 1:L + 1, :], w_k[1])
        + jnp.einsum("blc,cd->bld", xpad[:, 2:L + 2, :], w_k[2])
    )


if __name__ == "__main__":
    # Small shapes consistent with the module: batch=2, seq=16, c_in=4, d_model=32
    B, L, C_IN, D_MODEL = 2, 16, 4, 32

    key = jax.random.PRNGKey(0)
    kx, kw = jax.random.split(key)

    x = jax.random.normal(kx, (B, L, C_IN), dtype=jnp.float32)

    # Deterministic kaiming_normal_(mode='fan_in', nonlinearity='leaky_relu') init
    # for a Conv1d weight of shape (d_model, c_in, 3): fan_in = c_in * 3,
    # gain = sqrt(2 / (1 + 0.01^2)), std = gain / sqrt(fan_in).
    fan_in = C_IN * 3
    gain = math.sqrt(2.0 / (1.0 + 0.01 ** 2))
    std = gain / math.sqrt(fan_in)
    w_torch = std * jax.random.normal(kw, (D_MODEL, C_IN, 3), dtype=jnp.float32)

    # Rearrange to (3, C_in, d_model): w_k[k] = W[:, :, k].T, a ready matmul operand.
    w_k = jnp.transpose(w_torch, (2, 1, 0))

    out = token_embedding(x, w_k)
    out = jax.block_until_ready(out)

    ref = reference_forward(x, w_k)
    assert out.shape == (B, L, D_MODEL)
    assert jnp.allclose(out, ref, atol=1e-4, rtol=1e-4), "mismatch vs reference"

    print("KERNEL_OK")
</pallas_src>

<mosaic_0001>
module attributes {stable_mosaic.version = 11 : i64} {
  func.func @token_embed_kernel(%arg0: i32, %arg1: memref<1x16x4xf32, #tpu.memory_space<vmem>>, %arg2: memref<3x4x128xf32, #tpu.memory_space<vmem>>, %arg3: memref<1x16x128xf32, #tpu.memory_space<vmem>>) attributes {dimension_semantics = [#tpu.dimension_semantics<parallel>], iteration_bounds = array<i64: 2>, scalar_prefetch = 0 : i64, scratch_operands = 0 : i64, tpu.core_type = #tpu.core_type<tc>, window_params = [{transform_indices = @transform_0, window_bounds = array<i64: 1, 16, 4>}, {pipeline_mode = #tpu.pipeline_mode<synchronous>, transform_indices = @transform_1, window_bounds = array<i64: 3, 4, 128>}, {transform_indices = @transform_2, window_bounds = array<i64: 1, 16, 128>}]} {
    %c0 = arith.constant 0 : index
    %c0_0 = arith.constant 0 : index
    %c0_1 = arith.constant 0 : index
    %0 = vector.load %arg1[%c0, %c0_0, %c0_1] : memref<1x16x4xf32, #tpu.memory_space<vmem>>, vector<1x16x4xf32>
    %1 = vector.extract_strided_slice %0 {offsets = [0, 15, 0], sizes = [1, 1, 4], strides = [1, 1, 1]} : vector<1x16x4xf32> to vector<1x1x4xf32>
    %2 = vector.extract_strided_slice %0 {offsets = [0, 0, 0], sizes = [1, 15, 4], strides = [1, 1, 1]} : vector<1x16x4xf32> to vector<1x15x4xf32>
    %3 = tpu.concatenate %1, %2 in 1 : vector<1x1x4xf32>, vector<1x15x4xf32> -> vector<1x16x4xf32>
    %4 = vector.extract_strided_slice %0 {offsets = [0, 1, 0], sizes = [1, 15, 4], strides = [1, 1, 1]} : vector<1x16x4xf32> to vector<1x15x4xf32>
    %5 = vector.extract_strided_slice %0 {offsets = [0, 0, 0], sizes = [1, 1, 4], strides = [1, 1, 1]} : vector<1x16x4xf32> to vector<1x1x4xf32>
    %6 = tpu.concatenate %4, %5 in 1 : vector<1x15x4xf32>, vector<1x1x4xf32> -> vector<1x16x4xf32>
    %7 = vector.shape_cast %0 : vector<1x16x4xf32> to vector<16x4xf32>
    %8 = vector.shape_cast %3 : vector<1x16x4xf32> to vector<16x4xf32>
    %9 = vector.shape_cast %6 : vector<1x16x4xf32> to vector<16x4xf32>
    %c0_2 = arith.constant 0 : index
    %c0_3 = arith.constant 0 : index
    %c0_4 = arith.constant 0 : index
    %10 = vector.load %arg2[%c0_2, %c0_3, %c0_4] : memref<3x4x128xf32, #tpu.memory_space<vmem>>, vector<1x4x128xf32>
    %11 = vector.shape_cast %10 : vector<1x4x128xf32> to vector<4x128xf32>
    %cst = arith.constant dense<0.000000e+00> : vector<16x128xf32>
    %12 = tpu.matmul %8, %11, %cst {dimension_numbers = #tpu.dot_dimension_numbers<[1], [0], [0], [1], [0, 0, 1, 1], [], []>} : vector<16x4xf32>, vector<4x128xf32>, vector<16x128xf32> -> vector<16x128xf32>
    %c1 = arith.constant 1 : index
    %c0_5 = arith.constant 0 : index
    %c0_6 = arith.constant 0 : index
    %13 = vector.load %arg2[%c1, %c0_5, %c0_6] : memref<3x4x128xf32, #tpu.memory_space<vmem>>, vector<1x4x128xf32>
    %14 = vector.shape_cast %13 : vector<1x4x128xf32> to vector<4x128xf32>
    %cst_7 = arith.constant dense<0.000000e+00> : vector<16x128xf32>
    %15 = tpu.matmul %7, %14, %cst_7 {dimension_numbers = #tpu.dot_dimension_numbers<[1], [0], [0], [1], [0, 0, 1, 1], [], []>} : vector<16x4xf32>, vector<4x128xf32>, vector<16x128xf32> -> vector<16x128xf32>
    %16 = arith.addf %12, %15 : vector<16x128xf32>
    %c2 = arith.constant 2 : index
    %c0_8 = arith.constant 0 : index
    %c0_9 = arith.constant 0 : index
    %17 = vector.load %arg2[%c2, %c0_8, %c0_9] : memref<3x4x128xf32, #tpu.memory_space<vmem>>, vector<1x4x128xf32>
    %18 = vector.shape_cast %17 : vector<1x4x128xf32> to vector<4x128xf32>
    %cst_10 = arith.constant dense<0.000000e+00> : vector<16x128xf32>
    %19 = tpu.matmul %9, %18, %cst_10 {dimension_numbers = #tpu.dot_dimension_numbers<[1], [0], [0], [1], [0, 0, 1, 1], [], []>} : vector<16x4xf32>, vector<4x128xf32>, vector<16x128xf32> -> vector<16x128xf32>
    %20 = arith.addf %16, %19 : vector<16x128xf32>
    %21 = vector.shape_cast %20 : vector<16x128xf32> to vector<1x16x128xf32>
    %c0_11 = arith.constant 0 : index
    %c0_12 = arith.constant 0 : index
    %c0_13 = arith.constant 0 : index
    %22 = vector.load %arg3[%c0_11, %c0_12, %c0_13] : memref<1x16x128xf32, #tpu.memory_space<vmem>>, vector<1x16x128xf32>
    tpu.vector_store %arg3[%c0_11, %c0_12, %c0_13], %21 {strides = array<i32>} : memref<1x16x128xf32, #tpu.memory_space<vmem>>, vector<1x16x128xf32>,
    return
  }
  func.func @transform_0(%arg0: i32) -> (i32, i32, i32) {
    %c0_i32 = arith.constant 0 : i32
    %c0_i32_0 = arith.constant 0 : i32
    %c0_i32_1 = arith.constant 0 : i32
    return %arg0, %c0_i32, %c0_i32_0 : i32, i32, i32
  }
  func.func @transform_1(%arg0: i32) -> (i32, i32, i32) {
    %c0_i32 = arith.constant 0 : i32
    %c0_i32_0 = arith.constant 0 : i32
    %c0_i32_1 = arith.constant 0 : i32
    %c0_i32_2 = arith.constant 0 : i32
    return %c0_i32, %c0_i32_0, %c0_i32_1 : i32, i32, i32
  }
  func.func @transform_2(%arg0: i32) -> (i32, i32, i32) {
    %c0_i32 = arith.constant 0 : i32
    %c0_i32_0 = arith.constant 0 : i32
    %c0_i32_1 = arith.constant 0 : i32
    return %arg0, %c0_i32, %c0_i32_0 : i32, i32, i32
  }
}

</mosaic_0001>

<llo_original>
// kernel: tpu_custom_call.1
$region0: #{tpu_custom_call.1}
  #allocation0 [shape = 'u32[]', space=smem, size = 0x4, offset = 0x4, fixed_abs, tag = 'smem constant byte address 0x4 - core index']
  #allocation1 [shape = 'u32[144,128]{1,0:T(1,128)}', space=vmem, size = 0x12000, scoped, tag = 'internal scratch']
  %s0 = inlined_call_operand.vmem [shape: f32[2,16,4], index: 0, kind: input, shape index: {}]
  %s1 = inlined_call_operand.vmem [shape: f32[3,4,128], index: 1, kind: input, shape index: {}]
  %s2 = inlined_call_operand.hbm [shape: f32[2,16,128], index: 2, kind: output, shape index: {}]
  %s3 = sld [smem:[#allocation0]]
  $region41: #{tpu_custom_call.1} parent=0
    _
  %s5 = ssub.s32 1, %s3
  %s6 = scalar_select 0, %s5, %s3
  $region1: #{tpu_custom_call.1} parent=0
    #allocation2 [shape = 'u8[16384]{0}', space=vmem, size = 0x4000, scoped, tag = 'output window, operand 0']
    #allocation3 [shape = 's32[2]{0}', space=sflag, size = 0x8, scoped, tag = 'scoped memory for tpu_custom_call.1']
    %7 = vsyncpa [#allocation3], 0
    %s8 = scalar_lea.sflag [#allocation3], 1
    %9 = vsyncpa %s8, 0
    loop: start=0, step=1, limit=4
    $region2: #{tpu_custom_call.1} parent=1 // loop_pre_header
      _
    $region3: #{tpu_custom_call.1} parent=1 // loop_header
      %s11 = sphi 0, %s15
      %p12 = scmp.ge.s32.totalorder %s11, 4
      %s21 = sphi 0, %s23
      %s24 = sphi 0, %s21
      %s25 = sphi 0, %s24
      %s41 = sphi 0, %s25
      %s45 = sphi 0, %s45
      %s47 = sphi 0, %s45
      %s48 = sphi 0, %s47
      %s62 = sphi 0, %s48
      %s68 = sphi 0, %s70
      %s71 = sphi 0, %s68
      %s72 = sphi 0, %s71
      %s88 = sphi 0, %s72
    $region4: #{tpu_custom_call.1} parent=1 // loop_header_branch
      %14 = sbr.rel (%p12) target = $region8
    $region5: #{tpu_custom_call.1} parent=1 // loop_body
      %s16 = ssub.s32 %s11, 1
      %s17 = ssub.s32 %s11, 2
      %s18 = sadd.s32 %s11, 1
      %s19 = ssub.s32 %s11, %s18
      %p20 = scmp.eq.s32.totalorder %s19, 0
      %s22 = sadd.s32 %s21, 1
      %s23 = scalar_select %p20, %s21, %s22
      %p26 = pneg %p20
      %p27 = scmp.eq.s32.totalorder %s11, 1
      %p28 = por %p26, %p27
      %p29 = scmp.ne.s32.totalorder %s21, %s24
      %p30 = scmp.eq.s32.totalorder %s11, 0
      %p31 = por %p29, %p30
      %p32 = scmp.ne.s32.totalorder %s21, %s24
      %p33 = scmp.eq.s32.totalorder %s16, 1
      %p34 = por %p32, %p33
      %p35 = scmp.ne.s32.totalorder %s24, %s25
      %p36 = scmp.eq.s32.totalorder %s16, 0
      %p37 = por %p35, %p36
      %p38 = scmp.ne.s32.totalorder %s24, %s25
      %p39 = scmp.eq.s32.totalorder %s17, 1
      %p40 = por %p38, %p39
      %p42 = scmp.ne.s32.totalorder %s25, %s41
      %p43 = scmp.eq.s32.totalorder %s17, 0
      %p44 = por %p42, %p43
      %s46 = sadd.s32 %s45, 1
      %p49 = scmp.eq.s32.totalorder %s11, 1
      %p50 = scmp.ne.s32.totalorder %s45, %s47
      %p51 = scmp.eq.s32.totalorder %s11, 0
      %p52 = por %p50, %p51
      %p53 = scmp.ne.s32.totalorder %s45, %s47
      %p54 = scmp.eq.s32.totalorder %s16, 1
      %p55 = por %p53, %p54
      %p56 = scmp.ne.s32.totalorder %s47, %s48
      %p57 = scmp.eq.s32.totalorder %s16, 0
      %p58 = por %p56, %p57
      %p59 = scmp.ne.s32.totalorder %s47, %s48
      %p60 = scmp.eq.s32.totalorder %s17, 1
      %p61 = por %p59, %p60
      %p63 = scmp.ne.s32.totalorder %s48, %s62
      %p64 = scmp.eq.s32.totalorder %s17, 0
      %p65 = por %p63, %p64
      %s66 = ssub.s32 %s11, %s18
      %p67 = scmp.eq.s32.totalorder %s66, 0
      %s69 = sadd.s32 %s68, 1
      %s70 = scalar_select %p67, %s68, %s69
      %p73 = pneg %p67
      %p74 = scmp.eq.s32.totalorder %s11, 1
      %p75 = por %p73, %p74
      %p76 = scmp.ne.s32.totalorder %s68, %s71
      %p77 = scmp.eq.s32.totalorder %s11, 0
      %p78 = por %p76, %p77
      %p79 = scmp.ne.s32.totalorder %s68, %s71
      %p80 = scmp.eq.s32.totalorder %s16, 1
      %p81 = por %p79, %p80
      %p82 = scmp.ne.s32.totalorder %s71, %s72
      %p83 = scmp.eq.s32.totalorder %s16, 0
      %p84 = por %p82, %p83
      %p85 = scmp.ne.s32.totalorder %s71, %s72
      %p86 = scmp.eq.s32.totalorder %s17, 1
      %p87 = por %p85, %p86
      %p89 = scmp.ne.s32.totalorder %s72, %s88
      %p90 = scmp.eq.s32.totalorder %s17, 0
      %p91 = por %p89, %p90
      %p92 = scmp.le.s32.totalorder 1, %s11
      %p93 = scmp.lt.s32.totalorder %s11, 3
      %p94 = pnand %p92, %p93
      %p95 = pneg %p94
      // Predicated region
      $region9: #{tpu_custom_call.1} parent=5 // pred_check
        _
      $region10: #{tpu_custom_call.1} parent=5 // pred_check_branch
        %97 = sbr.rel (%p94) target = $region12
      $region11: #{tpu_custom_call.1} parent=5 // pred_region
        %s98 = ssub.s32 %s11, 1
        // Predicated region
        $region13: #{tpu_custom_call.1} parent=11 // pred_check
          %p99 = pneg %p58
        $region14: #{tpu_custom_call.1} parent=11 // pred_check_branch
          %101 = sbr.rel (%p99) target = $region16
        $region15: #{tpu_custom_call.1} parent=11 // pred_region
          _
        $region16: #{tpu_custom_call.1} parent=11 // pred_fallthru
          _
      $region12: #{tpu_custom_call.1} parent=5 // pred_fallthru
        _
      %p102 = scmp.lt.s32.totalorder %s11, 2
      // Predicated region
      $region17: #{tpu_custom_call.1} parent=5 // pred_check
        %p103 = pneg %p102
      $region18: #{tpu_custom_call.1} parent=5 // pred_check_branch
        %105 = sbr.rel (%p103) target = $region20
      $region19: #{tpu_custom_call.1} parent=5 // pred_region
        // Predicated region
        $region21: #{tpu_custom_call.1} parent=19 // pred_check
          %p106 = pneg %p31
        $region22: #{tpu_custom_call.1} parent=19 // pred_check_branch
          %108 = sbr.rel (%p106) target = $region24
        $region23: #{tpu_custom_call.1} parent=19 // pred_region
          %p109 = scmp.lt.s32.totalorder %s11, 1
          %s110 = scalar_select %p109, %s11, 1
          %s111 = smul.addr %s110, 2
          %s112 = smul.addr %s111, 8
          %s113 = scalar_lea.vmem %s0, %s112
        $region24: #{tpu_custom_call.1} parent=19 // pred_fallthru
          _
      $region20: #{tpu_custom_call.1} parent=5 // pred_fallthru
        _
      %p114 = scmp.le.s32.totalorder 1, %s11
      %p115 = scmp.lt.s32.totalorder %s11, 3
      %p116 = pnand %p114, %p115
      %p117 = pneg %p116
      // Predicated region
      $region25: #{tpu_custom_call.1} parent=5 // pred_check
        _
      $region26: #{tpu_custom_call.1} parent=5 // pred_check_branch
        %119 = sbr.rel (%p116) target = $region28
      $region27: #{tpu_custom_call.1} parent=5 // pred_region
        %s120 = ssub.s32 %s11, 1
        %p121 = scmp.lt.s32.totalorder %s16, 1
        %s122 = scalar_select %p121, %s16, 1
        %s123 = smul.addr %s122, 2
        %s124 = smul.addr %s123, 8
        %s125 = scalar_lea.vmem %s0, %s124
        %p126 = pneg %p37
        %p127 = pneg %p34
        %p128 = pneg %p58
        %p129 = pneg %p55
        %p130 = pneg %p84
        %p131 = pneg %p81
        %s132 = sand.u32 %s71, 1
        %s133 = scalar_lea.sflag [#allocation3], %s132
        %s134 = sand.u32 %s71, 1
        %s135 = smul.addr %s134, 16
        %s136 = scalar_lea.vmem [#allocation2], %s135
        %p137 = scmp.lt.s32.totalorder %s16, 1
        %s138 = scalar_select %p137, %s16, 1
        %s139 = smul.addr %s138, 2
        %s140 = smul.addr %s139, 8
        %s141 = scalar_lea.vmem %s0, %s140
        %v142 = vld [vmem:[%s141] sm:$0xff]
        %v143 = vld [vmem:[%s141 + $0x8] sm:$0xff]
        %v145 = vrot.slane %v143, 7
        %vm148 = vcmask 1040384
        %v149 = vrot.slane %v142, 7
        %v150 = vsel %vm148, %v149, %v145
        %v152 = vsel %vm148, %v145, %v149
        %vm153 = vcmask 1046528
        %v154 = vrot.slane %v142, 1
        %v155 = vrot.slane %v143, 1
        %v156 = vsel %vm153, %v154, %v155
        %v159 = vsel %vm153, %v155, %v154
        %v160 = vld [vmem:[%s1] sm:$0xf]
        %s161 = scalar_lea.vmem %s1, 4
        %v162 = vld [vmem:[%s161] sm:$0xf]
        %vm163 = vcmask 31744
        %v164 = vsel %vm163, %v142, 0
        %v166 = vsel %vm163, %v143, 0
        %vm168 = vcmask 1043456
        %v170 = vsel %vm168, %v162, 0
        %172 = vmatprep.subr.mxu0 0.0
        %173 = vmatpush1.msra.mxu0 0.0
        %174 = vmatprep.subr.mxu0 0.0
        %175 = vmatpush1.msra.mxu0 0.0
        %176 = vmatprep.subr.mxu0 0.0
        %177 = vmatpush1.msra.mxu0 0.0
        %178 = vmatprep.subr.mxu0 0.0
        %179 = vmatpush1.msra.mxu0 0.0
        %180 = vmatprep.subr.mxu0 0.0
        %181 = vmatpush1.msra.mxu0 0.0
        %182 = vmatprep.subr.mxu0 0.0
        %183 = vmatpush1.msra.mxu0 0.0
        %184 = vmatprep.subr.mxu0 0.0
        %185 = vmatpush1.msra.mxu0 0.0
        %186 = vmatprep.subr.mxu0 0.0
        %187 = vmatpush1.msra.mxu0 0.0
        %188 = vmatprep.subr.mxu0 0.0
        %189 = vmatpush1.msra.mxu0 0.0
        %190 = vmatprep.subr.mxu0 0.0
        %191 = vmatpush1.msra.mxu0 0.0
        %192 = vmatprep.subr.mxu0 0.0
        %193 = vmatpush1.msra.mxu0 0.0
        %194 = vmatprep.subr.mxu0 0.0
        %195 = vmatpush1.msra.mxu0 0.0
        %196 = vmatprep.subr.mxu0 0.0
        %197 = vmatpush1.msra.mxu0 0.0
        %198 = vmatprep.subr.mxu0 0.0
        %199 = vmatpush1.msra.mxu0 0.0
        %200 = vmatprep.subr.mxu0 0.0
        %201 = vmatpush1.msra.mxu0 0.0
        %202 = vmatprep.subr.mxu0 0.0
        %203 = vmatpush1.msra.mxu0 %v170
        %204 = vmatprep.subr.mxu0 0.0
        %205 = vmatpush2.msra.mxu0 0.0
        %206 = vmatprep.subr.mxu0 0.0
        %207 = vmatpush2.msra.mxu0 0.0
        %208 = vmatprep.subr.mxu0 0.0
        %209 = vmatpush2.msra.mxu0 0.0
        %210 = vmatprep.subr.mxu0 0.0
        %211 = vmatpush2.msra.mxu0 0.0
        %212 = vmatprep.subr.mxu0 0.0
        %213 = vmatpush2.msra.mxu0 0.0
        %214 = vmatprep.subr.mxu0 0.0
        %215 = vmatpush2.msra.mxu0 0.0
        %216 = vmatprep.subr.mxu0 0.0
        %217 = vmatpush2.msra.mxu0 0.0
        %218 = vmatprep.subr.mxu0 0.0
        %219 = vmatpush2.msra.mxu0 0.0
        %220 = vmatprep.subr.mxu0 0.0
        %221 = vmatpush2.msra.mxu0 0.0
        %222 = vmatprep.subr.mxu0 0.0
        %223 = vmatpush2.msra.mxu0 0.0
        %224 = vmatprep.subr.mxu0 0.0
        %225 = vmatpush2.msra.mxu0 0.0
        %226 = vmatprep.subr.mxu0 0.0
        %227 = vmatpush2.msra.mxu0 0.0
        %228 = vmatprep.subr.mxu0 0.0
        %229 = vmatpush2.msra.mxu0 0.0
        %230 = vmatprep.subr.mxu0 0.0
        %231 = vmatpush2.msra.mxu0 0.0
        %232 = vmatprep.subr.mxu0 0.0
        %233 = vmatpush2.msra.mxu0 0.0
        %234 = vmatprep.subr.mxu0 0.0
        %235 = vmatpush2.msra.mxu0 0.0
        %236 = vmatprep.mubr.f32.mxu0 0.0
        %237 = vmatmul.mubr.f32.gmra.mxu0 %v164
        %v238 = vpop.f32.mrf.mxu0
        %v239 = vadd.f32 0.0, %v238
        %v240 = vpop.f32.mrf.mxu0
        %241 = vmatprep.mubr.f32.mxu0 0.0
        %242 = vmatmul.mubr.f32.gmra.mxu0 %v166
        %v243 = vpop.f32.mrf.mxu0
        %v244 = vadd.f32 0.0, %v243
        %v245 = vpop.f32.mrf.mxu0
        %246 = vdwg.mxu0
        %v248 = vsel %vm163, %v152, 0
        %v250 = vsel %vm163, %v150, 0
        %v253 = vsel %vm168, %v160, 0
        %255 = vmatprep.subr.mxu0 0.0
        %256 = vmatpush1.msra.mxu0 0.0
        %257 = vmatprep.subr.mxu0 0.0
        %258 = vmatpush1.msra.mxu0 0.0
        %259 = vmatprep.subr.mxu0 0.0
        %260 = vmatpush1.msra.mxu0 0.0
        %261 = vmatprep.subr.mxu0 0.0
        %262 = vmatpush1.msra.mxu0 0.0
        %263 = vmatprep.subr.mxu0 0.0
        %264 = vmatpush1.msra.mxu0 0.0
        %265 = vmatprep.subr.mxu0 0.0
        %266 = vmatpush1.msra.mxu0 0.0
        %267 = vmatprep.subr.mxu0 0.0
        %268 = vmatpush1.msra.mxu0 0.0
        %269 = vmatprep.subr.mxu0 0.0
        %270 = vmatpush1.msra.mxu0 0.0
        %271 = vmatprep.subr.mxu0 0.0
        %272 = vmatpush1.msra.mxu0 0.0
        %273 = vmatprep.subr.mxu0 0.0
        %274 = vmatpush1.msra.mxu0 0.0
        %275 = vmatprep.subr.mxu0 0.0
        %276 = vmatpush1.msra.mxu0 0.0
        %277 = vmatprep.subr.mxu0 0.0
        %278 = vmatpush1.msra.mxu0 0.0
        %279 = vmatprep.subr.mxu0 0.0
        %280 = vmatpush1.msra.mxu0 0.0
        %281 = vmatprep.subr.mxu0 0.0
        %282 = vmatpush1.msra.mxu0 0.0
        %283 = vmatprep.subr.mxu0 0.0
        %284 = vmatpush1.msra.mxu0 0.0
        %285 = vmatprep.subr.mxu0 0.0
        %286 = vmatpush1.msra.mxu0 %v253
        %287 = vmatprep.subr.mxu0 0.0
        %288 = vmatpush2.msra.mxu0 0.0
        %289 = vmatprep.subr.mxu0 0.0
        %290 = vmatpush2.msra.mxu0 0.0
        %291 = vmatprep.subr.mxu0 0.0
        %292 = vmatpush2.msra.mxu0 0.0
        %293 = vmatprep.subr.mxu0 0.0
        %294 = vmatpush2.msra.mxu0 0.0
        %295 = vmatprep.subr.mxu0 0.0
        %296 = vmatpush2.msra.mxu0 0.0
        %297 = vmatprep.subr.mxu0 0.0
        %298 = vmatpush2.msra.mxu0 0.0
        %299 = vmatprep.subr.mxu0 0.0
        %300 = vmatpush2.msra.mxu0 0.0
        %301 = vmatprep.subr.mxu0 0.0
        %302 = vmatpush2.msra.mxu0 0.0
        %303 = vmatprep.subr.mxu0 0.0
        %304 = vmatpush2.msra.mxu0 0.0
        %305 = vmatprep.subr.mxu0 0.0
        %306 = vmatpush2.msra.mxu0 0.0
        %307 = vmatprep.subr.mxu0 0.0
        %308 = vmatpush2.msra.mxu0 0.0
        %309 = vmatprep.subr.mxu0 0.0
        %310 = vmatpush2.msra.mxu0 0.0
        %311 = vmatprep.subr.mxu0 0.0
        %312 = vmatpush2.msra.mxu0 0.0
        %313 = vmatprep.subr.mxu0 0.0
        %314 = vmatpush2.msra.mxu0 0.0
        %315 = vmatprep.subr.mxu0 0.0
        %316 = vmatpush2.msra.mxu0 0.0
        %317 = vmatprep.subr.mxu0 0.0
        %318 = vmatpush2.msra.mxu0 0.0
        %319 = vmatprep.mubr.f32.mxu0 0.0
        %320 = vmatmul.mubr.f32.gmra.mxu0 %v248
        %v321 = vpop.f32.mrf.mxu0
        %v322 = vadd.f32 %v239, %v321
        %v323 = vpop.f32.mrf.mxu0
        %324 = vmatprep.mubr.f32.mxu0 0.0
        %325 = vmatmul.mubr.f32.gmra.mxu0 %v250
        %v326 = vpop.f32.mrf.mxu0
        %v327 = vadd.f32 %v244, %v326
        %v328 = vpop.f32.mrf.mxu0
        %329 = vdwg.mxu0
        %s330 = scalar_lea.vmem %s1, 8
        %v331 = vld [vmem:[%s330] sm:$0xf]
        %v332 = vsel %vm163, %v156, 0
        %v335 = vsel %vm163, %v159, 0
        %v338 = vsel %vm168, %v331, 0
        %340 = vmatprep.subr.mxu0 0.0
        %341 = vmatpush1.msra.mxu0 0.0
        %342 = vmatprep.subr.mxu0 0.0
        %343 = vmatpush1.msra.mxu0 0.0
        %344 = vmatprep.subr.mxu0 0.0
        %345 = vmatpush1.msra.mxu0 0.0
        %346 = vmatprep.subr.mxu0 0.0
        %347 = vmatpush1.msra.mxu0 0.0
        %348 = vmatprep.subr.mxu0 0.0
        %349 = vmatpush1.msra.mxu0 0.0
        %350 = vmatprep.subr.mxu0 0.0
        %351 = vmatpush1.msra.mxu0 0.0
        %352 = vmatprep.subr.mxu0 0.0
        %353 = vmatpush1.msra.mxu0 0.0
        %354 = vmatprep.subr.mxu0 0.0
        %355 = vmatpush1.msra.mxu0 0.0
        %356 = vmatprep.subr.mxu0 0.0
        %357 = vmatpush1.msra.mxu0 0.0
        %358 = vmatprep.subr.mxu0 0.0
        %359 = vmatpush1.msra.mxu0 0.0
        %360 = vmatprep.subr.mxu0 0.0
        %361 = vmatpush1.msra.mxu0 0.0
        %362 = vmatprep.subr.mxu0 0.0
        %363 = vmatpush1.msra.mxu0 0.0
        %364 = vmatprep.subr.mxu0 0.0
        %365 = vmatpush1.msra.mxu0 0.0
        %366 = vmatprep.subr.mxu0 0.0
        %367 = vmatpush1.msra.mxu0 0.0
        %368 = vmatprep.subr.mxu0 0.0
        %369 = vmatpush1.msra.mxu0 0.0
        %370 = vmatprep.subr.mxu0 0.0
        %371 = vmatpush1.msra.mxu0 %v338
        %372 = vmatprep.subr.mxu0 0.0
        %373 = vmatpush2.msra.mxu0 0.0
        %374 = vmatprep.subr.mxu0 0.0
        %375 = vmatpush2.msra.mxu0 0.0
        %376 = vmatprep.subr.mxu0 0.0
        %377 = vmatpush2.msra.mxu0 0.0
        %378 = vmatprep.subr.mxu0 0.0
        %379 = vmatpush2.msra.mxu0 0.0
        %380 = vmatprep.subr.mxu0 0.0
        %381 = vmatpush2.msra.mxu0 0.0
        %382 = vmatprep.subr.mxu0 0.0
        %383 = vmatpush2.msra.mxu0 0.0
        %384 = vmatprep.subr.mxu0 0.0
        %385 = vmatpush2.msra.mxu0 0.0
        %386 = vmatprep.subr.mxu0 0.0
        %387 = vmatpush2.msra.mxu0 0.0
        %388 = vmatprep.subr.mxu0 0.0
        %389 = vmatpush2.msra.mxu0 0.0
        %390 = vmatprep.subr.mxu0 0.0
        %391 = vmatpush2.msra.mxu0 0.0
        %392 = vmatprep.subr.mxu0 0.0
        %393 = vmatpush2.msra.mxu0 0.0
        %394 = vmatprep.subr.mxu0 0.0
        %395 = vmatpush2.msra.mxu0 0.0
        %396 = vmatprep.subr.mxu0 0.0
        %397 = vmatpush2.msra.mxu0 0.0
        %398 = vmatprep.subr.mxu0 0.0
        %399 = vmatpush2.msra.mxu0 0.0
        %400 = vmatprep.subr.mxu0 0.0
        %401 = vmatpush2.msra.mxu0 0.0
        %402 = vmatprep.subr.mxu0 0.0
        %403 = vmatpush2.msra.mxu0 0.0
        %404 = vmatprep.mubr.f32.mxu0 0.0
        %405 = vmatmul.mubr.f32.gmra.mxu0 %v332
        %v406 = vpop.f32.mrf.mxu0
        %v407 = vadd.f32 0.0, %v406
        %v408 = vpop.f32.mrf.mxu0
        %409 = vmatprep.mubr.f32.mxu0 0.0
        %410 = vmatmul.mubr.f32.gmra.mxu0 %v335
        %v411 = vpop.f32.mrf.mxu0
        %v412 = vadd.f32 0.0, %v411
        %v413 = vpop.f32.mrf.mxu0
        %414 = vdwg.mxu0
        %v415 = vadd.f32 %v322, %v407
        %v416 = vadd.f32 %v327, %v412
        %417 = vst [vmem:[%s136] sm:$0xff] %v415
        %418 = vst [vmem:[%s136 + $0x8] sm:$0xff] %v416
        %s419 = sand.u32 %s71, 1
        %s420 = scalar_lea.sflag [#allocation3], %s419
        %s421 = sand.u32 %s71, 1
        %s422 = smul.addr %s421, 16
        %s423 = scalar_lea.vmem [#allocation2], %s422
        // Predicated region
        $region29: #{tpu_custom_call.1} parent=27 // pred_check
          %p424 = pneg %p81
        $region30: #{tpu_custom_call.1} parent=27 // pred_check_branch
          %426 = sbr.rel (%p424) target = $region32
        $region31: #{tpu_custom_call.1} parent=27 // pred_region
          %s428 = ssub.s32 256, 256
          %429 = vsyncadd %s420, %s428
          %s430 = smul.addr %s16, 2
          %s431 = smul.addr %s430, 128
          %s432 = scalar_lea.hbm %s2, %s431
          %s433 = sshll.u32 %s423, 4
          %s434 = int_to_ptr.vmem [resolvable:$true] %s433
          %439 = dma.vmem_to_hbm [thread:$0]  %s434, 256, %s432, %s420, 128, 128, 8
        $region32: #{tpu_custom_call.1} parent=27 // pred_fallthru
          _
      $region28: #{tpu_custom_call.1} parent=5 // pred_fallthru
        _
      %p440 = scmp.le.s32.totalorder 2, %s11
      // Predicated region
      $region33: #{tpu_custom_call.1} parent=5 // pred_check
        %p441 = pneg %p440
      $region34: #{tpu_custom_call.1} parent=5 // pred_check_branch
        %443 = sbr.rel (%p441) target = $region36
      $region35: #{tpu_custom_call.1} parent=5 // pred_region
        %s444 = ssub.s32 %s11, 2
        // Predicated region
        $region37: #{tpu_custom_call.1} parent=35 // pred_check
          %p445 = pneg %p87
        $region38: #{tpu_custom_call.1} parent=35 // pred_check_branch
          %447 = sbr.rel (%p445) target = $region40
        $region39: #{tpu_custom_call.1} parent=35 // pred_region
          %s448 = sand.u32 %s72, 1
          %s449 = scalar_lea.sflag [#allocation3], %s448
          %s450 = sand.u32 %s72, 1
          %s451 = smul.addr %s450, 16
          %s452 = scalar_lea.vmem [#allocation2], %s451
          %453 = dma.done %s449, 256
        $region40: #{tpu_custom_call.1} parent=35 // pred_fallthru
          _
      $region36: #{tpu_custom_call.1} parent=5 // pred_fallthru
        _
    $region6: #{tpu_custom_call.1} parent=1 // loop_footer
      %s15 = sadd.s32 1, %s11
    $region7: #{tpu_custom_call.1} parent=1 // loop_footer_branch
      %10 = sbr.rel target = $region3
    $region8: #{tpu_custom_call.1} parent=1 // loop_exit
      _
    %454 = vsyncpa [#allocation3], 1
    %s455 = scalar_lea.sflag [#allocation3], 1
    %456 = vsyncpa %s455, 1

</llo_original>
